<compile_context>
chip_gen: v5e
topology: v5e:2x2
jax: 0.10.0
libtpu: 0.0.40
codegen_flags: <defaults>
</compile_context>

<pallas_src>
import math

import jax
import jax.numpy as jnp
import numpy as np
from jax import lax
from jax.experimental import pallas as pl
from jax.experimental.pallas import tpu as pltpu

# ----------------------------- model hyper-parameters -----------------------------
N_DIM = 4          # input dim
M_DIM = 2          # latent dim
NU = 3.0
RECON_SIGMA = 1.0
REG_WEIGHT = 1.0
H = 32             # hidden width (num_layers)
NEG_SLOPE = 0.01   # nn.LeakyReLU default

BATCH = 512        # rows per forward call
IN_ROWS = 8        # packed input rows: x (4) | eps (2) | v (1) | zero pad (1)


def _log_t_normalizing_const(nu, d):
    return math.lgamma((nu + d) / 2.0) - (
        math.lgamma(nu / 2.0) + d / 2.0 * (math.log(nu) + math.log(math.pi)))


def _constants():
    gamma = -2.0 / (NU + N_DIM + M_DIM)
    log_tau_base = (-N_DIM * math.log(RECON_SIGMA)
                    + _log_t_normalizing_const(NU, N_DIM)
                    - math.log(NU + N_DIM - 2.0) + math.log(NU - 2.0))
    const_2bar1 = (1.0 + M_DIM / (NU + N_DIM - 2.0)) * math.exp(
        -gamma / (1.0 + gamma) * log_tau_base)
    tau = math.exp(2.0 / (NU + N_DIM - 2.0) * log_tau_base)
    return gamma, const_2bar1, tau


GAMMA, CONST_2BAR1, TAU = _constants()

# ---------------------- packed weight-slab layout (static) -------------------------
def _align8(n):
    return ((n + 7) // 8) * 8


# Each weight is stored transposed (out, in) in an 8-row-aligned segment; all biases
# live as columns of a single (32, ncols) "bias" segment.
_SEGMENTS = [("w1", H), ("w2", H), ("wh", 2 * M_DIM),
             ("wd1", H), ("wd2", H), ("wd3", N_DIM), ("bias", H)]
_OFF, _ROWS = {}, {}
_o = 0
for _name, _r in _SEGMENTS:
    _OFF[_name] = _o
    _ROWS[_name] = _align8(_r)
    _o += _ROWS[_name]
W_ROWS = _o                        # 176 rows x 32 cols x 4 B

_BCOL = {"b1": 0, "b2": 1, "bh": 2, "bd1": 3, "bd2": 4, "bd3": 5}


def _leaky(a):
    return jnp.where(a > 0, a, NEG_SLOPE * a)


# ----------------------------------- kernel ---------------------------------------
def t3vae_kernel(xin_ref, w_ref, out_ref):
    xin = xin_ref[...]                                   # (IN_ROWS, TILE_B) feature-major
    x = xin[0:N_DIM, :]                                  # (4, B)
    eps = xin[N_DIM:N_DIM + M_DIM, :]                    # (2, B)
    v = xin[N_DIM + M_DIM:N_DIM + M_DIM + 1, :]          # (1, B)

    bias = w_ref[_OFF["bias"]:_OFF["bias"] + _ROWS["bias"], :]   # (32, 32)

    def linear(a, wname, in_dim, bname):
        out8 = _ROWS[wname]                               # 8-aligned output rows
        w = w_ref[_OFF[wname]:_OFF[wname] + out8, :]      # (out8, 32), padded rows/cols = 0
        b = bias[0:out8, _BCOL[bname]:_BCOL[bname] + 1]   # (out8, 1)
        return jnp.dot(w[:, 0:in_dim], a, preferred_element_type=jnp.float32) + b

    # ---- encoder MLP ----
    h = _leaky(linear(x, "w1", N_DIM, "b1"))              # (32, B)
    h = _leaky(linear(h, "w2", H, "b2"))                  # (32, B)
    head = linear(h, "wh", H, "bh")                       # (8, B); rows 4..7 are zero
    mu = head[0:M_DIM, :]                                 # (2, B)
    logvar = head[M_DIM:2 * M_DIM, :]                     # (2, B)

    # ---- t-distributed reparameterization (sqrt(nu/nu_n)*sqrt(nu_n) folded to sqrt(nu)) ----
    z = mu + jnp.float32(math.sqrt(NU)) * jnp.exp(0.5 * logvar) * eps * lax.rsqrt(v)

    # ---- decoder MLP ----
    d = _leaky(linear(z, "wd1", M_DIM, "bd1"))            # (32, B)
    d = _leaky(linear(d, "wd2", H, "bd2"))                # (32, B)
    recon_x = linear(d, "wd3", H, "bd3")[0:N_DIM, :]      # (4, B)

    # ---- per-tile partial loss sums (mean over the full batch is done in the wrapper) ----
    sq_err = jnp.sum((recon_x - x) ** 2, axis=0, keepdims=True)                 # (1, B)
    recon_sum = jnp.sum(sq_err, axis=1, keepdims=True) * jnp.float32(1.0 / RECON_SIGMA ** 2)

    mu_norm_sq = jnp.sum(mu * mu, axis=0, keepdims=True)                        # (1, B)
    trace_var = jnp.float32(NU / (NU + N_DIM - 2.0)) * jnp.sum(
        jnp.exp(logvar), axis=0, keepdims=True)
    log_det_var = jnp.float32(-GAMMA / (2.0 + 2.0 * GAMMA)) * jnp.sum(
        logvar, axis=0, keepdims=True)
    reg_per = (mu_norm_sq + trace_var
               - jnp.float32(CONST_2BAR1) * jnp.exp(log_det_var) + jnp.float32(TAU))
    reg_sum = jnp.sum(reg_per, axis=1, keepdims=True)                           # (1, 1)

    # ---- lane-dense (8,128) output: lane 0 = recon partial, lane 1 = reg partial ----
    lane = lax.broadcasted_iota(jnp.int32, (1, 128), 1)
    row = (recon_sum * (lane == 0).astype(jnp.float32)
           + reg_sum * (lane == 1).astype(jnp.float32))                          # (1, 128)
    out_ref[...] = jnp.broadcast_to(row, (8, 128))


# --------------------------------- wrapper / glue ----------------------------------
def _num_grid_tiles():
    # 2 "parallel" steps only when the chip has two TensorCores (v4 / v5p megacore, v7x);
    # extra grid steps are a serial loop (pure overhead) on single-TC chips (v5e / v6e).
    try:
        kind = jax.devices()[0].device_kind.lower()
    except Exception:
        return 1
    return 2 if any(t in kind for t in ("v4", "v5p", "7")) else 1


NUM_TILES = _num_grid_tiles()


def init_params(key):
    """PyTorch-Linear-like init (uniform +-1/sqrt(fan_in)); weights stored (in, out)."""
    def linear(k, fan_in, fan_out):
        kw, kb = jax.random.split(k)
        bound = 1.0 / math.sqrt(fan_in)
        w = jax.random.uniform(kw, (fan_in, fan_out), jnp.float32, -bound, bound)
        b = jax.random.uniform(kb, (1, fan_out), jnp.float32, -bound, bound)
        return w, b

    keys = jax.random.split(key, 7)
    p = {}
    p["w1"], p["b1"] = linear(keys[0], N_DIM, H)
    p["w2"], p["b2"] = linear(keys[1], H, H)
    p["wmu"], p["bmu"] = linear(keys[2], H, M_DIM)
    p["wlv"], p["blv"] = linear(keys[3], H, M_DIM)
    p["wd1"], p["bd1"] = linear(keys[4], M_DIM, H)
    p["wd2"], p["bd2"] = linear(keys[5], H, H)
    p["wd3"], p["bd3"] = linear(keys[6], H, N_DIM)
    return p


def pack_params(p):
    """Pack all weights/biases into one (W_ROWS, H) f32 slab, weights transposed to (out, in).
    Invariant: unused slab entries (padded rows/cols, bias tails) must stay exactly zero."""
    slab = jnp.zeros((W_ROWS, H), jnp.float32)

    def put_w(s, name, w_in_out):                 # (in, out) -> (out, in) segment
        wt = w_in_out.T
        r, c = wt.shape
        return s.at[_OFF[name]:_OFF[name] + r, :c].set(wt)

    def put_b(s, name, b_row):                    # (1, out) -> bias column
        out = b_row.shape[1]
        return s.at[_OFF["bias"]:_OFF["bias"] + out, _BCOL[name]].set(b_row[0])

    slab = put_w(slab, "w1", p["w1"]);   slab = put_b(slab, "b1", p["b1"])
    slab = put_w(slab, "w2", p["w2"]);   slab = put_b(slab, "b2", p["b2"])
    wh = jnp.concatenate([p["wmu"], p["wlv"]], axis=1)    # fused mu|logvar head
    bh = jnp.concatenate([p["bmu"], p["blv"]], axis=1)
    slab = put_w(slab, "wh", wh);        slab = put_b(slab, "bh", bh)
    slab = put_w(slab, "wd1", p["wd1"]); slab = put_b(slab, "bd1", p["bd1"])
    slab = put_w(slab, "wd2", p["wd2"]); slab = put_b(slab, "bd2", p["bd2"])
    slab = put_w(slab, "wd3", p["wd3"]); slab = put_b(slab, "bd3", p["bd3"])
    return slab


@jax.jit
def t3vae_forward(x, eps, v, w_slab):
    B = x.shape[0]
    tile_b = B // NUM_TILES
    assert B % NUM_TILES == 0 and tile_b % 128 == 0, "batch per tile must be a multiple of 128"

    # Single feature-major packed input: rows = x | eps | v | zero pad  -> (IN_ROWS, B).
    pad = jnp.zeros((IN_ROWS - (N_DIM + M_DIM + 1), B), jnp.float32)
    xin = jnp.concatenate([x.T, eps.T, v.T, pad], axis=0)

    partials = pl.pallas_call(
        t3vae_kernel,
        out_shape=jax.ShapeDtypeStruct((NUM_TILES, 8, 128), jnp.float32),
        grid=(NUM_TILES,),
        in_specs=[
            pl.BlockSpec((IN_ROWS, tile_b), lambda i: (0, i)),   # batch tiled along lanes
            pl.BlockSpec((W_ROWS, H), lambda i: (0, 0)),         # constant -> VMEM-resident
        ],
        out_specs=pl.BlockSpec((None, 8, 128), lambda i: (i, 0, 0)),
        compiler_params=pltpu.CompilerParams(dimension_semantics=("parallel",)),
    )(xin, w_slab)

    recon = jnp.sum(partials[:, 0, 0]) / B
    reg = jnp.sum(partials[:, 0, 1]) / B
    total = recon + REG_WEIGHT * reg
    return recon, reg, total


# --------------------------------- numpy reference ---------------------------------
def reference(x, eps, v, params):
    leaky = lambda a: np.where(a > 0, a, NEG_SLOPE * a)
    h = leaky(x @ params["w1"] + params["b1"])
    h = leaky(h @ params["w2"] + params["b2"])
    mu = h @ params["wmu"] + params["bmu"]
    logvar = h @ params["wlv"] + params["blv"]
    nu_n = NU + N_DIM
    std = math.sqrt(NU / nu_n) * np.exp(0.5 * logvar)
    z = mu + std * eps * np.sqrt(nu_n / v)
    d = leaky(z @ params["wd1"] + params["bd1"])
    d = leaky(d @ params["wd2"] + params["bd2"])
    recon_x = d @ params["wd3"] + params["bd3"]
    recon = np.mean(np.sum((recon_x - x) ** 2, axis=1)) / RECON_SIGMA ** 2
    mu_norm_sq = np.sum(mu * mu, axis=1)
    trace_var = (NU / (NU + N_DIM - 2.0)) * np.sum(np.exp(logvar), axis=1)
    log_det_var = (-GAMMA / (2.0 + 2.0 * GAMMA)) * np.sum(logvar, axis=1)
    reg = np.mean(mu_norm_sq + trace_var - CONST_2BAR1 * np.exp(log_det_var) + TAU)
    return np.array([recon, reg, recon + REG_WEIGHT * reg], dtype=np.float64)


# -------------------------------------- main ---------------------------------------
if __name__ == "__main__":
    key = jax.random.PRNGKey(0)
    kx, keps, kv, kp = jax.random.split(key, 4)

    x = jax.random.normal(kx, (BATCH, N_DIM), jnp.float32)
    eps = jax.random.normal(keps, (BATCH, M_DIM), jnp.float32)
    # Chi2(k) == Gamma(k/2, scale=2)
    v = 2.0 * jax.random.gamma(kv, (NU + N_DIM) / 2.0, (BATCH, 1), jnp.float32)

    params = init_params(kp)
    w_slab = pack_params(params)

    recon, reg, total = jax.block_until_ready(t3vae_forward(x, eps, v, w_slab))

    ref = reference(
        np.asarray(x, np.float64), np.asarray(eps, np.float64), np.asarray(v, np.float64),
        {k: np.asarray(w, np.float64) for k, w in params.items()})
    np.testing.assert_allclose(
        np.array([float(recon), float(reg), float(total)]), ref, rtol=2e-3, atol=2e-3)
    print("KERNEL_OK")
</pallas_src>

<mosaic_0001>
module attributes {stable_mosaic.version = 11 : i64} {
  func.func @t3vae_kernel(%arg0: i32, %arg1: memref<8x512xf32, #tpu.memory_space<vmem>>, %arg2: memref<176x32xf32, #tpu.memory_space<vmem>>, %arg3: memref<1x8x128xf32, #tpu.memory_space<vmem>>) attributes {dimension_semantics = [#tpu.dimension_semantics<parallel>], iteration_bounds = array<i64: 1>, scalar_prefetch = 0 : i64, scratch_operands = 0 : i64, tpu.core_type = #tpu.core_type<tc>, window_params = [{transform_indices = @transform_0, window_bounds = array<i64: 8, 512>}, {pipeline_mode = #tpu.pipeline_mode<synchronous>, transform_indices = @transform_1, window_bounds = array<i64: 176, 32>}, {transform_indices = @transform_2, window_bounds = array<i64: 1, 8, 128>}]} {
    %c0 = arith.constant 0 : index
    %c0_0 = arith.constant 0 : index
    %0 = vector.load %arg1[%c0, %c0_0] : memref<8x512xf32, #tpu.memory_space<vmem>>, vector<8x512xf32>
    %1 = vector.extract_strided_slice %0 {offsets = [0, 0], sizes = [4, 512], strides = [1, 1]} : vector<8x512xf32> to vector<4x512xf32>
    %2 = vector.extract_strided_slice %0 {offsets = [4, 0], sizes = [2, 512], strides = [1, 1]} : vector<8x512xf32> to vector<2x512xf32>
    %3 = vector.extract_strided_slice %0 {offsets = [6, 0], sizes = [1, 512], strides = [1, 1]} : vector<8x512xf32> to vector<1x512xf32>
    %c144 = arith.constant 144 : index
    %c0_1 = arith.constant 0 : index
    %4 = vector.load %arg2[%c144, %c0_1] : memref<176x32xf32, #tpu.memory_space<vmem>>, vector<32x32xf32>
    %c0_2 = arith.constant 0 : index
    %c0_3 = arith.constant 0 : index
    %5 = vector.load %arg2[%c0_2, %c0_3] : memref<176x32xf32, #tpu.memory_space<vmem>>, vector<32x32xf32>
    %6 = vector.extract_strided_slice %4 {offsets = [0, 0], sizes = [32, 1], strides = [1, 1]} : vector<32x32xf32> to vector<32x1xf32>
    %7 = vector.extract_strided_slice %5 {offsets = [0, 0], sizes = [32, 4], strides = [1, 1]} : vector<32x32xf32> to vector<32x4xf32>
    %cst = arith.constant dense<0.000000e+00> : vector<32x512xf32>
    %8 = tpu.matmul %7, %1, %cst {dimension_numbers = #tpu.dot_dimension_numbers<[1], [0], [0], [1], [0, 0, 1, 1], [], []>} : vector<32x4xf32>, vector<4x512xf32>, vector<32x512xf32> -> vector<32x512xf32>
    %9 = vector.broadcast %6 : vector<32x1xf32> to vector<32x512xf32>
    %10 = arith.addf %8, %9 : vector<32x512xf32>
    %cst_4 = arith.constant 0.000000e+00 : f32
    %11 = vector.broadcast %cst_4 : f32 to vector<32x512xf32>
    %12 = arith.cmpf ogt, %10, %11 : vector<32x512xf32>
    %cst_5 = arith.constant 0.00999999977 : f32
    %13 = vector.broadcast %cst_5 : f32 to vector<32x512xf32>
    %14 = arith.mulf %13, %10 : vector<32x512xf32>
    %15 = arith.select %12, %10, %14 : vector<32x512xi1>, vector<32x512xf32>
    %c32 = arith.constant 32 : index
    %c0_6 = arith.constant 0 : index
    %16 = vector.load %arg2[%c32, %c0_6] : memref<176x32xf32, #tpu.memory_space<vmem>>, vector<32x32xf32>
    %17 = vector.extract_strided_slice %4 {offsets = [0, 1], sizes = [32, 1], strides = [1, 1]} : vector<32x32xf32> to vector<32x1xf32>
    %cst_7 = arith.constant dense<0.000000e+00> : vector<32x512xf32>
    %18 = tpu.matmul %16, %15, %cst_7 {dimension_numbers = #tpu.dot_dimension_numbers<[1], [0], [0], [1], [0, 0, 1, 1], [], []>} : vector<32x32xf32>, vector<32x512xf32>, vector<32x512xf32> -> vector<32x512xf32>
    %19 = vector.broadcast %17 : vector<32x1xf32> to vector<32x512xf32>
    %20 = arith.addf %18, %19 : vector<32x512xf32>
    %cst_8 = arith.constant 0.000000e+00 : f32
    %21 = vector.broadcast %cst_8 : f32 to vector<32x512xf32>
    %22 = arith.cmpf ogt, %20, %21 : vector<32x512xf32>
    %cst_9 = arith.constant 0.00999999977 : f32
    %23 = vector.broadcast %cst_9 : f32 to vector<32x512xf32>
    %24 = arith.mulf %23, %20 : vector<32x512xf32>
    %25 = arith.select %22, %20, %24 : vector<32x512xi1>, vector<32x512xf32>
    %c64 = arith.constant 64 : index
    %c0_10 = arith.constant 0 : index
    %26 = vector.load %arg2[%c64, %c0_10] : memref<176x32xf32, #tpu.memory_space<vmem>>, vector<8x32xf32>
    %27 = vector.extract_strided_slice %4 {offsets = [0, 2], sizes = [8, 1], strides = [1, 1]} : vector<32x32xf32> to vector<8x1xf32>
    %cst_11 = arith.constant dense<0.000000e+00> : vector<8x512xf32>
    %28 = tpu.matmul %26, %25, %cst_11 {dimension_numbers = #tpu.dot_dimension_numbers<[1], [0], [0], [1], [0, 0, 1, 1], [], []>} : vector<8x32xf32>, vector<32x512xf32>, vector<8x512xf32> -> vector<8x512xf32>
    %29 = vector.broadcast %27 : vector<8x1xf32> to vector<8x512xf32>
    %30 = arith.addf %28, %29 : vector<8x512xf32>
    %31 = vector.extract_strided_slice %30 {offsets = [0, 0], sizes = [2, 512], strides = [1, 1]} : vector<8x512xf32> to vector<2x512xf32>
    %32 = vector.extract_strided_slice %30 {offsets = [2, 0], sizes = [2, 512], strides = [1, 1]} : vector<8x512xf32> to vector<2x512xf32>
    %cst_12 = arith.constant 5.000000e-01 : f32
    %33 = vector.broadcast %cst_12 : f32 to vector<2x512xf32>
    %34 = arith.mulf %33, %32 : vector<2x512xf32>
    %35 = math.exp %34 : vector<2x512xf32>
    %cst_13 = arith.constant 1.73205078 : f32
    %36 = vector.broadcast %cst_13 : f32 to vector<2x512xf32>
    %37 = arith.mulf %36, %35 : vector<2x512xf32>
    %38 = arith.mulf %37, %2 : vector<2x512xf32>
    %39 = math.rsqrt %3 : vector<1x512xf32>
    %40 = vector.broadcast %39 : vector<1x512xf32> to vector<2x512xf32>
    %41 = arith.mulf %38, %40 : vector<2x512xf32>
    %42 = arith.addf %31, %41 : vector<2x512xf32>
    %c72 = arith.constant 72 : index
    %c0_14 = arith.constant 0 : index
    %43 = vector.load %arg2[%c72, %c0_14] : memref<176x32xf32, #tpu.memory_space<vmem>>, vector<32x32xf32>
    %44 = vector.extract_strided_slice %4 {offsets = [0, 3], sizes = [32, 1], strides = [1, 1]} : vector<32x32xf32> to vector<32x1xf32>
    %45 = vector.extract_strided_slice %43 {offsets = [0, 0], sizes = [32, 2], strides = [1, 1]} : vector<32x32xf32> to vector<32x2xf32>
    %cst_15 = arith.constant dense<0.000000e+00> : vector<32x512xf32>
    %46 = tpu.matmul %45, %42, %cst_15 {dimension_numbers = #tpu.dot_dimension_numbers<[1], [0], [0], [1], [0, 0, 1, 1], [], []>} : vector<32x2xf32>, vector<2x512xf32>, vector<32x512xf32> -> vector<32x512xf32>
    %47 = vector.broadcast %44 : vector<32x1xf32> to vector<32x512xf32>
    %48 = arith.addf %46, %47 : vector<32x512xf32>
    %cst_16 = arith.constant 0.000000e+00 : f32
    %49 = vector.broadcast %cst_16 : f32 to vector<32x512xf32>
    %50 = arith.cmpf ogt, %48, %49 : vector<32x512xf32>
    %cst_17 = arith.constant 0.00999999977 : f32
    %51 = vector.broadcast %cst_17 : f32 to vector<32x512xf32>
    %52 = arith.mulf %51, %48 : vector<32x512xf32>
    %53 = arith.select %50, %48, %52 : vector<32x512xi1>, vector<32x512xf32>
    %c104 = arith.constant 104 : index
    %c0_18 = arith.constant 0 : index
    %54 = vector.load %arg2[%c104, %c0_18] : memref<176x32xf32, #tpu.memory_space<vmem>>, vector<32x32xf32>
    %55 = vector.extract_strided_slice %4 {offsets = [0, 4], sizes = [32, 1], strides = [1, 1]} : vector<32x32xf32> to vector<32x1xf32>
    %cst_19 = arith.constant dense<0.000000e+00> : vector<32x512xf32>
    %56 = tpu.matmul %54, %53, %cst_19 {dimension_numbers = #tpu.dot_dimension_numbers<[1], [0], [0], [1], [0, 0, 1, 1], [], []>} : vector<32x32xf32>, vector<32x512xf32>, vector<32x512xf32> -> vector<32x512xf32>
    %57 = vector.broadcast %55 : vector<32x1xf32> to vector<32x512xf32>
    %58 = arith.addf %56, %57 : vector<32x512xf32>
    %cst_20 = arith.constant 0.000000e+00 : f32
    %59 = vector.broadcast %cst_20 : f32 to vector<32x512xf32>
    %60 = arith.cmpf ogt, %58, %59 : vector<32x512xf32>
    %cst_21 = arith.constant 0.00999999977 : f32
    %61 = vector.broadcast %cst_21 : f32 to vector<32x512xf32>
    %62 = arith.mulf %61, %58 : vector<32x512xf32>
    %63 = arith.select %60, %58, %62 : vector<32x512xi1>, vector<32x512xf32>
    %c136 = arith.constant 136 : index
    %c0_22 = arith.constant 0 : index
    %64 = vector.load %arg2[%c136, %c0_22] : memref<176x32xf32, #tpu.memory_space<vmem>>, vector<8x32xf32>
    %65 = vector.extract_strided_slice %4 {offsets = [0, 5], sizes = [8, 1], strides = [1, 1]} : vector<32x32xf32> to vector<8x1xf32>
    %cst_23 = arith.constant dense<0.000000e+00> : vector<8x512xf32>
    %66 = tpu.matmul %64, %63, %cst_23 {dimension_numbers = #tpu.dot_dimension_numbers<[1], [0], [0], [1], [0, 0, 1, 1], [], []>} : vector<8x32xf32>, vector<32x512xf32>, vector<8x512xf32> -> vector<8x512xf32>
    %67 = vector.broadcast %65 : vector<8x1xf32> to vector<8x512xf32>
    %68 = arith.addf %66, %67 : vector<8x512xf32>
    %69 = vector.extract_strided_slice %68 {offsets = [0, 0], sizes = [4, 512], strides = [1, 1]} : vector<8x512xf32> to vector<4x512xf32>
    %70 = arith.subf %69, %1 : vector<4x512xf32>
    %71 = arith.mulf %70, %70 : vector<4x512xf32>
    %cst_24 = arith.constant dense<0.000000e+00> : vector<512xf32>
    %72 = vector.multi_reduction <add>, %71, %cst_24 [0] : vector<4x512xf32> to vector<512xf32>
    %73 = vector.shape_cast %72 : vector<512xf32> to vector<1x512xf32>
    %cst_25 = arith.constant dense<0.000000e+00> : vector<1xf32>
    %74 = vector.multi_reduction <add>, %73, %cst_25 [1] : vector<1x512xf32> to vector<1xf32>
    %75 = vector.shape_cast %74 : vector<1xf32> to vector<1x1xf32>
    %cst_26 = arith.constant 1.000000e+00 : f32
    %76 = vector.broadcast %cst_26 : f32 to vector<1x1xf32>
    %77 = arith.mulf %75, %76 : vector<1x1xf32>
    %78 = arith.mulf %31, %31 : vector<2x512xf32>
    %cst_27 = arith.constant dense<0.000000e+00> : vector<512xf32>
    %79 = vector.multi_reduction <add>, %78, %cst_27 [0] : vector<2x512xf32> to vector<512xf32>
    %80 = vector.shape_cast %79 : vector<512xf32> to vector<1x512xf32>
    %81 = math.exp %32 : vector<2x512xf32>
    %cst_28 = arith.constant dense<0.000000e+00> : vector<512xf32>
    %82 = vector.multi_reduction <add>, %81, %cst_28 [0] : vector<2x512xf32> to vector<512xf32>
    %83 = vector.shape_cast %82 : vector<512xf32> to vector<1x512xf32>
    %cst_29 = arith.constant 6.000000e-01 : f32
    %84 = vector.broadcast %cst_29 : f32 to vector<1x512xf32>
    %85 = arith.mulf %84, %83 : vector<1x512xf32>
    %cst_30 = arith.constant dense<0.000000e+00> : vector<512xf32>
    %86 = vector.multi_reduction <add>, %32, %cst_30 [0] : vector<2x512xf32> to vector<512xf32>
    %87 = vector.shape_cast %86 : vector<512xf32> to vector<1x512xf32>
    %cst_31 = arith.constant 0.142857149 : f32
    %88 = vector.broadcast %cst_31 : f32 to vector<1x512xf32>
    %89 = arith.mulf %88, %87 : vector<1x512xf32>
    %90 = arith.addf %80, %85 : vector<1x512xf32>
    %91 = math.exp %89 : vector<1x512xf32>
    %cst_32 = arith.constant 0.357853204 : f32
    %92 = vector.broadcast %cst_32 : f32 to vector<1x512xf32>
    %93 = arith.mulf %92, %91 : vector<1x512xf32>
    %94 = arith.subf %90, %93 : vector<1x512xf32>
    %cst_33 = arith.constant 0.148117915 : f32
    %95 = vector.broadcast %cst_33 : f32 to vector<1x512xf32>
    %96 = arith.addf %94, %95 : vector<1x512xf32>
    %cst_34 = arith.constant dense<0.000000e+00> : vector<1xf32>
    %97 = vector.multi_reduction <add>, %96, %cst_34 [1] : vector<1x512xf32> to vector<1xf32>
    %98 = vector.shape_cast %97 : vector<1xf32> to vector<1x1xf32>
    %99 = tpu.iota {dimensions = array<i32: 1>} : vector<1x128xi32>
    %c0_i32 = arith.constant 0 : i32
    %100 = vector.broadcast %c0_i32 : i32 to vector<1x128xi32>
    %101 = arith.cmpi eq, %99, %100 : vector<1x128xi32>
    %102 = arith.extui %101 : vector<1x128xi1> to vector<1x128xi32>
    %103 = arith.sitofp %102 : vector<1x128xi32> to vector<1x128xf32>
    %104 = vector.broadcast %77 : vector<1x1xf32> to vector<1x128xf32>
    %105 = arith.mulf %104, %103 : vector<1x128xf32>
    %c1_i32 = arith.constant 1 : i32
    %106 = vector.broadcast %c1_i32 : i32 to vector<1x128xi32>
    %107 = arith.cmpi eq, %99, %106 : vector<1x128xi32>
    %108 = arith.extui %107 : vector<1x128xi1> to vector<1x128xi32>
    %109 = arith.sitofp %108 : vector<1x128xi32> to vector<1x128xf32>
    %110 = vector.broadcast %98 : vector<1x1xf32> to vector<1x128xf32>
    %111 = arith.mulf %110, %109 : vector<1x128xf32>
    %112 = arith.addf %105, %111 : vector<1x128xf32>
    %113 = vector.shape_cast %112 : vector<1x128xf32> to vector<1x128xf32>
    %114 = vector.broadcast %113 : vector<1x128xf32> to vector<8x128xf32>
    %c0_35 = arith.constant 0 : index
    %c0_36 = arith.constant 0 : index
    %c0_37 = arith.constant 0 : index
    %115 = vector.load %arg3[%c0_35, %c0_36, %c0_37] : memref<1x8x128xf32, #tpu.memory_space<vmem>>, vector<1x8x128xf32>
    %116 = vector.shape_cast %115 : vector<1x8x128xf32> to vector<8x128xf32>
    %117 = vector.shape_cast %114 : vector<8x128xf32> to vector<1x8x128xf32>
    tpu.vector_store %arg3[%c0_35, %c0_36, %c0_37], %117 {strides = array<i32>} : memref<1x8x128xf32, #tpu.memory_space<vmem>>, vector<1x8x128xf32>,
    return
  }
  func.func @transform_0(%arg0: i32) -> (i32, i32) {
    %c0_i32 = arith.constant 0 : i32
    %c0_i32_0 = arith.constant 0 : i32
    return %c0_i32, %arg0 : i32, i32
  }
  func.func @transform_1(%arg0: i32) -> (i32, i32) {
    %c0_i32 = arith.constant 0 : i32
    %c0_i32_0 = arith.constant 0 : i32
    %c0_i32_1 = arith.constant 0 : i32
    return %c0_i32, %c0_i32_0 : i32, i32
  }
  func.func @transform_2(%arg0: i32) -> (i32, i32, i32) {
    %c0_i32 = arith.constant 0 : i32
    %c0_i32_0 = arith.constant 0 : i32
    %c0_i32_1 = arith.constant 0 : i32
    return %arg0, %c0_i32, %c0_i32_0 : i32, i32, i32
  }
}

</mosaic_0001>

<llo_original>
// kernel: t3vae_forward.1
$region0: #{t3vae_forward.1}
  #allocation0 [shape = 'u32[]', space=smem, size = 0x4, offset = 0x4, fixed_abs, tag = 'smem constant byte address 0x4 - core index']
  #allocation1 [shape = 'u32[72,128]{1,0:T(1,128)}', space=vmem, size = 0x9000, scoped, tag = 'internal scratch']
  %s0 = inlined_call_operand.vmem [shape: f32[8,512], index: 0, kind: input, shape index: {}]
  %s1 = inlined_call_operand.vmem [shape: f32[176,32], index: 1, kind: input, shape index: {}]
  %s2 = inlined_call_operand.vmem [shape: f32[1,8,128], index: 2, kind: output, shape index: {}]
  %s3 = sld [smem:[#allocation0]]
  $region18: #{t3vae_forward.1} parent=0
    _
  %s5 = ssub.s32 1, %s3
  %s6 = scalar_select 0, %s5, %s3
  // Predicated region
  $region2: #{t3vae_forward.1} parent=0 // pred_check
    _
  $region3: #{t3vae_forward.1} parent=0 // pred_check_branch
    %8 = sbr.rel (0) target = $region5
  $region4: #{t3vae_forward.1} parent=0 // pred_region
    _
  $region5: #{t3vae_forward.1} parent=0 // pred_fallthru
    _
  // Predicated region
  $region6: #{t3vae_forward.1} parent=0 // pred_check
    _
  $region7: #{t3vae_forward.1} parent=0 // pred_check_branch
    %10 = sbr.rel (0) target = $region9
  $region8: #{t3vae_forward.1} parent=0 // pred_region
    _
  $region9: #{t3vae_forward.1} parent=0 // pred_fallthru
    _
  %v11 = vld [vmem:[%s0] sm:$0xff]
  %v12 = vld [vmem:[%s0 + $0x8] sm:$0xff]
  %v13 = vld [vmem:[%s0 + $0x10] sm:$0xff]
  %v14 = vld [vmem:[%s0 + $0x18] sm:$0xff]
  %v15 = vld [vmem:[%s1 + $0x90] sm:$0xff]
  %v16 = vld [vmem:[%s1 + $0x98] sm:$0xff]
  %v17 = vld [vmem:[%s1 + $0xa0] sm:$0xff]
  %v18 = vld [vmem:[%s1 + $0xa8] sm:$0xff]
  %v19 = vld [vmem:[%s1] sm:$0xff]
  %v20 = vld [vmem:[%s1 + $0x8] sm:$0xff]
  %v21 = vld [vmem:[%s1 + $0x10] sm:$0xff]
  %v22 = vld [vmem:[%s1 + $0x18] sm:$0xff]
  %24 = vset.pattern.permute.xlu0 0
  %25 = vperm.xlu0 %24, %v15
  %v26 = vpop.permute.xlu0 %25
  %29 = vset.pattern.permute.xlu0 0
  %30 = vperm.xlu0 %29, %v16
  %v31 = vpop.permute.xlu0 %30
  %34 = vset.pattern.permute.xlu0 0
  %35 = vperm.xlu0 %34, %v17
  %v36 = vpop.permute.xlu0 %35
  %39 = vset.pattern.permute.xlu0 0
  %40 = vperm.xlu0 %39, %v18
  %v41 = vpop.permute.xlu0 %40
  %vm43 = vcmask 31744
  %v45 = vsel %vm43, %v19, 0
  %v48 = vsel %vm43, %v20, 0
  %v51 = vsel %vm43, %v21, 0
  %v54 = vsel %vm43, %v22, 0
  %vm56 = vcmask 1043456
  %v58 = vsel %vm56, %v11, 0
  %v61 = vsel %vm56, %v12, 0
  %v64 = vsel %vm56, %v13, 0
  %v67 = vsel %vm56, %v14, 0
  %69 = vmatpush.msra.mxu0 0.0
  %70 = vmatpush.msra.mxu0 0.0
  %71 = vmatpush.msra.mxu0 0.0
  %72 = vmatpush.msra.mxu0 0.0
  %73 = vmatpush.msra.mxu0 0.0
  %74 = vmatpush.msra.mxu0 0.0
  %75 = vmatpush.msra.mxu0 0.0
  %76 = vmatpush.msra.mxu0 0.0
  %77 = vmatpush.msra.mxu0 0.0
  %78 = vmatpush.msra.mxu0 0.0
  %79 = vmatpush.msra.mxu0 0.0
  %80 = vmatpush.msra.mxu0 0.0
  %81 = vmatpush.msra.mxu0 0.0
  %82 = vmatpush.msra.mxu0 0.0
  %83 = vmatpush.msra.mxu0 0.0
  %84 = vmatpush.msra.mxu0 %v58
  %85 = vmatmul.f32.gmra.mxu0 %v45
  %v86 = vpop.f32.mrf.mxu0
  %v87 = vadd.f32 %v26, %v86
  %88 = vmatmul.f32.gmra.mxu0 %v48
  %v89 = vpop.f32.mrf.mxu0
  %v90 = vadd.f32 %v31, %v89
  %91 = vmatmul.f32.gmra.mxu0 %v51
  %v92 = vpop.f32.mrf.mxu0
  %v93 = vadd.f32 %v36, %v92
  %94 = vmatmul.f32.gmra.mxu0 %v54
  %v95 = vpop.f32.mrf.mxu0
  %v96 = vadd.f32 %v41, %v95
  %97 = vdwg.mxu0
  %98 = vmatpush.msra.mxu0 0.0
  %99 = vmatpush.msra.mxu0 0.0
  %100 = vmatpush.msra.mxu0 0.0
  %101 = vmatpush.msra.mxu0 0.0
  %102 = vmatpush.msra.mxu0 0.0
  %103 = vmatpush.msra.mxu0 0.0
  %104 = vmatpush.msra.mxu0 0.0
  %105 = vmatpush.msra.mxu0 0.0
  %106 = vmatpush.msra.mxu0 0.0
  %107 = vmatpush.msra.mxu0 0.0
  %108 = vmatpush.msra.mxu0 0.0
  %109 = vmatpush.msra.mxu0 0.0
  %110 = vmatpush.msra.mxu0 0.0
  %111 = vmatpush.msra.mxu0 0.0
  %112 = vmatpush.msra.mxu0 0.0
  %113 = vmatpush.msra.mxu0 %v61
  %114 = vmatmul.f32.gmra.mxu0 %v45
  %v115 = vpop.f32.mrf.mxu0
  %v116 = vadd.f32 %v26, %v115
  %117 = vmatmul.f32.gmra.mxu0 %v48
  %v118 = vpop.f32.mrf.mxu0
  %v119 = vadd.f32 %v31, %v118
  %120 = vmatmul.f32.gmra.mxu0 %v51
  %v121 = vpop.f32.mrf.mxu0
  %v122 = vadd.f32 %v36, %v121
  %123 = vmatmul.f32.gmra.mxu0 %v54
  %v124 = vpop.f32.mrf.mxu0
  %v125 = vadd.f32 %v41, %v124
  %126 = vdwg.mxu0
  %127 = vmatpush.msra.mxu0 0.0
  %128 = vmatpush.msra.mxu0 0.0
  %129 = vmatpush.msra.mxu0 0.0
  %130 = vmatpush.msra.mxu0 0.0
  %131 = vmatpush.msra.mxu0 0.0
  %132 = vmatpush.msra.mxu0 0.0
  %133 = vmatpush.msra.mxu0 0.0
  %134 = vmatpush.msra.mxu0 0.0
  %135 = vmatpush.msra.mxu0 0.0
  %136 = vmatpush.msra.mxu0 0.0
  %137 = vmatpush.msra.mxu0 0.0
  %138 = vmatpush.msra.mxu0 0.0
  %139 = vmatpush.msra.mxu0 0.0
  %140 = vmatpush.msra.mxu0 0.0
  %141 = vmatpush.msra.mxu0 0.0
  %142 = vmatpush.msra.mxu0 %v64
  %143 = vmatmul.f32.gmra.mxu0 %v45
  %v144 = vpop.f32.mrf.mxu0
  %v145 = vadd.f32 %v26, %v144
  %146 = vmatmul.f32.gmra.mxu0 %v48
  %v147 = vpop.f32.mrf.mxu0
  %v148 = vadd.f32 %v31, %v147
  %149 = vmatmul.f32.gmra.mxu0 %v51
  %v150 = vpop.f32.mrf.mxu0
  %v151 = vadd.f32 %v36, %v150
  %152 = vmatmul.f32.gmra.mxu0 %v54
  %v153 = vpop.f32.mrf.mxu0
  %v154 = vadd.f32 %v41, %v153
  %155 = vdwg.mxu0
  %156 = vmatpush.msra.mxu0 0.0
  %157 = vmatpush.msra.mxu0 0.0
  %158 = vmatpush.msra.mxu0 0.0
  %159 = vmatpush.msra.mxu0 0.0
  %160 = vmatpush.msra.mxu0 0.0
  %161 = vmatpush.msra.mxu0 0.0
  %162 = vmatpush.msra.mxu0 0.0
  %163 = vmatpush.msra.mxu0 0.0
  %164 = vmatpush.msra.mxu0 0.0
  %165 = vmatpush.msra.mxu0 0.0
  %166 = vmatpush.msra.mxu0 0.0
  %167 = vmatpush.msra.mxu0 0.0
  %168 = vmatpush.msra.mxu0 0.0
  %169 = vmatpush.msra.mxu0 0.0
  %170 = vmatpush.msra.mxu0 0.0
  %171 = vmatpush.msra.mxu0 %v67
  %172 = vmatmul.f32.gmra.mxu0 %v45
  %v173 = vpop.f32.mrf.mxu0
  %v174 = vadd.f32 %v26, %v173
  %175 = vmatmul.f32.gmra.mxu0 %v48
  %v176 = vpop.f32.mrf.mxu0
  %v177 = vadd.f32 %v31, %v176
  %178 = vmatmul.f32.gmra.mxu0 %v51
  %v179 = vpop.f32.mrf.mxu0
  %v180 = vadd.f32 %v36, %v179
  %181 = vmatmul.f32.gmra.mxu0 %v54
  %v182 = vpop.f32.mrf.mxu0
  %v183 = vadd.f32 %v41, %v182
  %184 = vdwg.mxu0
  %vm185 = vcmp.gt.f32.partialorder %v87, 0.0
  %vm186 = vcmp.gt.f32.partialorder %v116, 0.0
  %vm187 = vcmp.gt.f32.partialorder %v145, 0.0
  %vm188 = vcmp.gt.f32.partialorder %v174, 0.0
  %vm189 = vcmp.gt.f32.partialorder %v90, 0.0
  %vm190 = vcmp.gt.f32.partialorder %v119, 0.0
  %vm191 = vcmp.gt.f32.partialorder %v148, 0.0
  %vm192 = vcmp.gt.f32.partialorder %v177, 0.0
  %vm193 = vcmp.gt.f32.partialorder %v93, 0.0
  %vm194 = vcmp.gt.f32.partialorder %v122, 0.0
  %vm195 = vcmp.gt.f32.partialorder %v151, 0.0
  %vm196 = vcmp.gt.f32.partialorder %v180, 0.0
  %vm197 = vcmp.gt.f32.partialorder %v96, 0.0
  %vm198 = vcmp.gt.f32.partialorder %v125, 0.0
  %vm199 = vcmp.gt.f32.partialorder %v154, 0.0
  %vm200 = vcmp.gt.f32.partialorder %v183, 0.0
  %v201 = vmul.f32 %v87, 0.01
  %v202 = vmul.f32 %v116, 0.01
  %v203 = vmul.f32 %v145, 0.01
  %v204 = vmul.f32 %v174, 0.01
  %v205 = vmul.f32 %v90, 0.01
  %v206 = vmul.f32 %v119, 0.01
  %v207 = vmul.f32 %v148, 0.01
  %v208 = vmul.f32 %v177, 0.01
  %v209 = vmul.f32 %v93, 0.01
  %v210 = vmul.f32 %v122, 0.01
  %v211 = vmul.f32 %v151, 0.01
  %v212 = vmul.f32 %v180, 0.01
  %v213 = vmul.f32 %v96, 0.01
  %v214 = vmul.f32 %v125, 0.01
  %v215 = vmul.f32 %v154, 0.01
  %v216 = vmul.f32 %v183, 0.01
  %v217 = vsel %vm185, %v87, %v201
  %v218 = vsel %vm186, %v116, %v202
  %v219 = vsel %vm187, %v145, %v203
  %v220 = vsel %vm188, %v174, %v204
  %v221 = vsel %vm189, %v90, %v205
  %v222 = vsel %vm190, %v119, %v206
  %v223 = vsel %vm191, %v148, %v207
  %v224 = vsel %vm192, %v177, %v208
  %v225 = vsel %vm193, %v93, %v209
  %v226 = vsel %vm194, %v122, %v210
  %v227 = vsel %vm195, %v151, %v211
  %v228 = vsel %vm196, %v180, %v212
  %v229 = vsel %vm197, %v96, %v213
  %v230 = vsel %vm198, %v125, %v214
  %v231 = vsel %vm199, %v154, %v215
  %v232 = vsel %vm200, %v183, %v216
  %v233 = vld [vmem:[%s1 + $0x20] sm:$0xff]
  %v234 = vld [vmem:[%s1 + $0x28] sm:$0xff]
  %v235 = vld [vmem:[%s1 + $0x30] sm:$0xff]
  %v236 = vld [vmem:[%s1 + $0x38] sm:$0xff]
  %237 = vset.pattern.permute.xlu0 1
  %238 = vperm.xlu0 %237, %v15
  %v239 = vpop.permute.xlu0 %238
  %241 = vset.pattern.permute.xlu0 1
  %242 = vperm.xlu0 %241, %v16
  %v243 = vpop.permute.xlu0 %242
  %245 = vset.pattern.permute.xlu0 1
  %246 = vperm.xlu0 %245, %v17
  %v247 = vpop.permute.xlu0 %246
  %249 = vset.pattern.permute.xlu0 1
  %250 = vperm.xlu0 %249, %v18
  %v251 = vpop.permute.xlu0 %250
  %vm253 = vcmask 261120
  %v255 = vsel %vm253, %v233, 0
  %v258 = vsel %vm253, %v234, 0
  %v261 = vsel %vm253, %v235, 0
  %v264 = vsel %vm253, %v236, 0
  %266 = vmatpush.msra.mxu0 0.0
  %267 = vmatpush.msra.mxu0 0.0
  %268 = vmatpush.msra.mxu0 0.0
  %269 = vmatpush.msra.mxu0 0.0
  %270 = vmatpush.msra.mxu0 0.0
  %271 = vmatpush.msra.mxu0 0.0
  %272 = vmatpush.msra.mxu0 0.0
  %273 = vmatpush.msra.mxu0 0.0
  %274 = vmatpush.msra.mxu0 0.0
  %275 = vmatpush.msra.mxu0 0.0
  %276 = vmatpush.msra.mxu0 0.0
  %277 = vmatpush.msra.mxu0 0.0
  %278 = vmatpush.msra.mxu0 %v229
  %279 = vmatpush.msra.mxu0 %v225
  %280 = vmatpush.msra.mxu0 %v221
  %281 = vmatpush.msra.mxu0 %v217
  %282 = vmatmul.f32.gmra.mxu0 %v255
  %v283 = vpop.f32.mrf.mxu0
  %v284 = vadd.f32 %v239, %v283
  %285 = vmatmul.f32.gmra.mxu0 %v258
  %v286 = vpop.f32.mrf.mxu0
  %v287 = vadd.f32 %v243, %v286
  %288 = vmatmul.f32.gmra.mxu0 %v261
  %v289 = vpop.f32.mrf.mxu0
  %v290 = vadd.f32 %v247, %v289
  %291 = vmatmul.f32.gmra.mxu0 %v264
  %v292 = vpop.f32.mrf.mxu0
  %v293 = vadd.f32 %v251, %v292
  %294 = vdwg.mxu0
  %295 = vmatpush.msra.mxu0 0.0
  %296 = vmatpush.msra.mxu0 0.0
  %297 = vmatpush.msra.mxu0 0.0
  %298 = vmatpush.msra.mxu0 0.0
  %299 = vmatpush.msra.mxu0 0.0
  %300 = vmatpush.msra.mxu0 0.0
  %301 = vmatpush.msra.mxu0 0.0
  %302 = vmatpush.msra.mxu0 0.0
  %303 = vmatpush.msra.mxu0 0.0
  %304 = vmatpush.msra.mxu0 0.0
  %305 = vmatpush.msra.mxu0 0.0
  %306 = vmatpush.msra.mxu0 0.0
  %307 = vmatpush.msra.mxu0 %v230
  %308 = vmatpush.msra.mxu0 %v226
  %309 = vmatpush.msra.mxu0 %v222
  %310 = vmatpush.msra.mxu0 %v218
  %311 = vmatmul.f32.gmra.mxu0 %v255
  %v312 = vpop.f32.mrf.mxu0
  %v313 = vadd.f32 %v239, %v312
  %314 = vmatmul.f32.gmra.mxu0 %v258
  %v315 = vpop.f32.mrf.mxu0
  %v316 = vadd.f32 %v243, %v315
  %317 = vmatmul.f32.gmra.mxu0 %v261
  %v318 = vpop.f32.mrf.mxu0
  %v319 = vadd.f32 %v247, %v318
  %320 = vmatmul.f32.gmra.mxu0 %v264
  %v321 = vpop.f32.mrf.mxu0
  %v322 = vadd.f32 %v251, %v321
  %323 = vdwg.mxu0
  %324 = vmatpush.msra.mxu0 0.0
  %325 = vmatpush.msra.mxu0 0.0
  %326 = vmatpush.msra.mxu0 0.0
  %327 = vmatpush.msra.mxu0 0.0
  %328 = vmatpush.msra.mxu0 0.0
  %329 = vmatpush.msra.mxu0 0.0
  %330 = vmatpush.msra.mxu0 0.0
  %331 = vmatpush.msra.mxu0 0.0
  %332 = vmatpush.msra.mxu0 0.0
  %333 = vmatpush.msra.mxu0 0.0
  %334 = vmatpush.msra.mxu0 0.0
  %335 = vmatpush.msra.mxu0 0.0
  %336 = vmatpush.msra.mxu0 %v231
  %337 = vmatpush.msra.mxu0 %v227
  %338 = vmatpush.msra.mxu0 %v223
  %339 = vmatpush.msra.mxu0 %v219
  %340 = vmatmul.f32.gmra.mxu0 %v255
  %v341 = vpop.f32.mrf.mxu0
  %v342 = vadd.f32 %v239, %v341
  %343 = vmatmul.f32.gmra.mxu0 %v258
  %v344 = vpop.f32.mrf.mxu0
  %v345 = vadd.f32 %v243, %v344
  %346 = vmatmul.f32.gmra.mxu0 %v261
  %v347 = vpop.f32.mrf.mxu0
  %v348 = vadd.f32 %v247, %v347
  %349 = vmatmul.f32.gmra.mxu0 %v264
  %v350 = vpop.f32.mrf.mxu0
  %v351 = vadd.f32 %v251, %v350
  %352 = vdwg.mxu0
  %353 = vmatpush.msra.mxu0 0.0
  %354 = vmatpush.msra.mxu0 0.0
  %355 = vmatpush.msra.mxu0 0.0
  %356 = vmatpush.msra.mxu0 0.0
  %357 = vmatpush.msra.mxu0 0.0
  %358 = vmatpush.msra.mxu0 0.0
  %359 = vmatpush.msra.mxu0 0.0
  %360 = vmatpush.msra.mxu0 0.0
  %361 = vmatpush.msra.mxu0 0.0
  %362 = vmatpush.msra.mxu0 0.0
  %363 = vmatpush.msra.mxu0 0.0
  %364 = vmatpush.msra.mxu0 0.0
  %365 = vmatpush.msra.mxu0 %v232
  %366 = vmatpush.msra.mxu0 %v228
  %367 = vmatpush.msra.mxu0 %v224
  %368 = vmatpush.msra.mxu0 %v220
  %369 = vmatmul.f32.gmra.mxu0 %v255
  %v370 = vpop.f32.mrf.mxu0
  %v371 = vadd.f32 %v239, %v370
  %372 = vmatmul.f32.gmra.mxu0 %v258
  %v373 = vpop.f32.mrf.mxu0
  %v374 = vadd.f32 %v243, %v373
  %375 = vmatmul.f32.gmra.mxu0 %v261
  %v376 = vpop.f32.mrf.mxu0
  %v377 = vadd.f32 %v247, %v376
  %378 = vmatmul.f32.gmra.mxu0 %v264
  %v379 = vpop.f32.mrf.mxu0
  %v380 = vadd.f32 %v251, %v379
  %381 = vdwg.mxu0
  %vm382 = vcmp.gt.f32.partialorder %v284, 0.0
  %vm383 = vcmp.gt.f32.partialorder %v313, 0.0
  %vm384 = vcmp.gt.f32.partialorder %v342, 0.0
  %vm385 = vcmp.gt.f32.partialorder %v371, 0.0
  %vm386 = vcmp.gt.f32.partialorder %v287, 0.0
  %vm387 = vcmp.gt.f32.partialorder %v316, 0.0
  %vm388 = vcmp.gt.f32.partialorder %v345, 0.0
  %vm389 = vcmp.gt.f32.partialorder %v374, 0.0
  %vm390 = vcmp.gt.f32.partialorder %v290, 0.0
  %vm391 = vcmp.gt.f32.partialorder %v319, 0.0
  %vm392 = vcmp.gt.f32.partialorder %v348, 0.0
  %vm393 = vcmp.gt.f32.partialorder %v377, 0.0
  %vm394 = vcmp.gt.f32.partialorder %v293, 0.0
  %vm395 = vcmp.gt.f32.partialorder %v322, 0.0
  %vm396 = vcmp.gt.f32.partialorder %v351, 0.0
  %vm397 = vcmp.gt.f32.partialorder %v380, 0.0
  %v398 = vmul.f32 %v284, 0.01
  %v399 = vmul.f32 %v313, 0.01
  %v400 = vmul.f32 %v342, 0.01
  %v401 = vmul.f32 %v371, 0.01
  %v402 = vmul.f32 %v287, 0.01
  %v403 = vmul.f32 %v316, 0.01
  %v404 = vmul.f32 %v345, 0.01
  %v405 = vmul.f32 %v374, 0.01
  %v406 = vmul.f32 %v290, 0.01
  %v407 = vmul.f32 %v319, 0.01
  %v408 = vmul.f32 %v348, 0.01
  %v409 = vmul.f32 %v377, 0.01
  %v410 = vmul.f32 %v293, 0.01
  %v411 = vmul.f32 %v322, 0.01
  %v412 = vmul.f32 %v351, 0.01
  %v413 = vmul.f32 %v380, 0.01
  %v414 = vsel %vm382, %v284, %v398
  %v415 = vsel %vm383, %v313, %v399
  %v416 = vsel %vm384, %v342, %v400
  %v417 = vsel %vm385, %v371, %v401
  %v418 = vsel %vm386, %v287, %v402
  %v419 = vsel %vm387, %v316, %v403
  %v420 = vsel %vm388, %v345, %v404
  %v421 = vsel %vm389, %v374, %v405
  %v422 = vsel %vm390, %v290, %v406
  %v423 = vsel %vm391, %v319, %v407
  %v424 = vsel %vm392, %v348, %v408
  %v425 = vsel %vm393, %v377, %v409
  %v426 = vsel %vm394, %v293, %v410
  %v427 = vsel %vm395, %v322, %v411
  %v428 = vsel %vm396, %v351, %v412
  %v429 = vsel %vm397, %v380, %v413
  %v430 = vld [vmem:[%s1 + $0x40] sm:$0xff]
  %431 = vset.pattern.permute.xlu0 2
  %432 = vperm.xlu0 %431, %v15
  %v433 = vpop.permute.xlu0 %432
  %v436 = vsel %vm253, %v430, 0
  %438 = vmatpush.msra.mxu0 0.0
  %439 = vmatpush.msra.mxu0 0.0
  %440 = vmatpush.msra.mxu0 0.0
  %441 = vmatpush.msra.mxu0 0.0
  %442 = vmatpush.msra.mxu0 0.0
  %443 = vmatpush.msra.mxu0 0.0
  %444 = vmatpush.msra.mxu0 0.0
  %445 = vmatpush.msra.mxu0 0.0
  %446 = vmatpush.msra.mxu0 0.0
  %447 = vmatpush.msra.mxu0 0.0
  %448 = vmatpush.msra.mxu0 0.0
  %449 = vmatpush.msra.mxu0 0.0
  %450 = vmatpush.msra.mxu0 %v426
  %451 = vmatpush.msra.mxu0 %v422
  %452 = vmatpush.msra.mxu0 %v418
  %453 = vmatpush.msra.mxu0 %v414
  %454 = vmatmul.f32.gmra.mxu0 %v436
  %v455 = vpop.f32.mrf.mxu0
  %v456 = vadd.f32 %v433, %v455
  %457 = vdwg.mxu0
  %458 = vmatpush.msra.mxu0 0.0
  %459 = vmatpush.msra.mxu0 0.0
  %460 = vmatpush.msra.mxu0 0.0
  %461 = vmatpush.msra.mxu0 0.0
  %462 = vmatpush.msra.mxu0 0.0
  %463 = vmatpush.msra.mxu0 0.0
  %464 = vmatpush.msra.mxu0 0.0
  %465 = vmatpush.msra.mxu0 0.0
  %466 = vmatpush.msra.mxu0 0.0
  %467 = vmatpush.msra.mxu0 0.0
  %468 = vmatpush.msra.mxu0 0.0
  %469 = vmatpush.msra.mxu0 0.0
  %470 = vmatpush.msra.mxu0 %v427
  %471 = vmatpush.msra.mxu0 %v423
  %472 = vmatpush.msra.mxu0 %v419
  %473 = vmatpush.msra.mxu0 %v415
  %474 = vmatmul.f32.gmra.mxu0 %v436
  %v475 = vpop.f32.mrf.mxu0
  %v476 = vadd.f32 %v433, %v475
  %477 = vdwg.mxu0
  %478 = vmatpush.msra.mxu0 0.0
  %479 = vmatpush.msra.mxu0 0.0
  %480 = vmatpush.msra.mxu0 0.0
  %481 = vmatpush.msra.mxu0 0.0
  %482 = vmatpush.msra.mxu0 0.0
  %483 = vmatpush.msra.mxu0 0.0
  %484 = vmatpush.msra.mxu0 0.0
  %485 = vmatpush.msra.mxu0 0.0
  %486 = vmatpush.msra.mxu0 0.0
  %487 = vmatpush.msra.mxu0 0.0
  %488 = vmatpush.msra.mxu0 0.0
  %489 = vmatpush.msra.mxu0 0.0
  %490 = vmatpush.msra.mxu0 %v428
  %491 = vmatpush.msra.mxu0 %v424
  %492 = vmatpush.msra.mxu0 %v420
  %493 = vmatpush.msra.mxu0 %v416
  %494 = vmatmul.f32.gmra.mxu0 %v436
  %v495 = vpop.f32.mrf.mxu0
  %v496 = vadd.f32 %v433, %v495
  %497 = vdwg.mxu0
  %498 = vmatpush.msra.mxu0 0.0
  %499 = vmatpush.msra.mxu0 0.0
  %500 = vmatpush.msra.mxu0 0.0
  %501 = vmatpush.msra.mxu0 0.0
  %502 = vmatpush.msra.mxu0 0.0
  %503 = vmatpush.msra.mxu0 0.0
  %504 = vmatpush.msra.mxu0 0.0
  %505 = vmatpush.msra.mxu0 0.0
  %506 = vmatpush.msra.mxu0 0.0
  %507 = vmatpush.msra.mxu0 0.0
  %508 = vmatpush.msra.mxu0 0.0
  %509 = vmatpush.msra.mxu0 0.0
  %510 = vmatpush.msra.mxu0 %v429
  %511 = vmatpush.msra.mxu0 %v425
  %512 = vmatpush.msra.mxu0 %v421
  %513 = vmatpush.msra.mxu0 %v417
  %514 = vmatmul.f32.gmra.mxu0 %v436
  %v515 = vpop.f32.mrf.mxu0
  %v516 = vadd.f32 %v433, %v515
  %517 = vdwg.mxu0
  %v518 = vmul.f32 %v456, 0.5
  %v519 = vmul.f32 %v476, 0.5
  %v520 = vmul.f32 %v496, 0.5
  %v521 = vmul.f32 %v516, 0.5
  %v522 = vmul.f32 %v518, 1.442695
  %v523 = vpow.pop %v522
  %v524 = vmul.f32 %v519, 1.442695
  %v525 = vpow.pop %v524
  %v526 = vmul.f32 %v520, 1.442695
  %v527 = vpow.pop %v526
  %v528 = vmul.f32 %v521, 1.442695
  %v529 = vpow.pop %v528
  %v530 = vmul.f32 %v523, 1.7320508
  %v531 = vmul.f32 %v525, 1.7320508
  %v532 = vmul.f32 %v527, 1.7320508
  %v533 = vmul.f32 %v529, 1.7320508
  %v534 = vrot.slane %v11, 2
  %v535 = vrot.slane %v12, 2
  %v536 = vrot.slane %v13, 2
  %v537 = vrot.slane %v14, 2
  %v542 = vmul.f32 %v530, %v534
  %v543 = vmul.f32 %v531, %v535
  %v544 = vmul.f32 %v532, %v536
  %v545 = vmul.f32 %v533, %v537
  %v546 = vrsqrt.pop %v11
  %v547 = vmul.f32 %v546, %v11
  %v548 = vmul.f32 %v547, %v546
  %v549 = vmul.f32 0.5, %v548
  %v550 = vsub.f32 1.5, %v549
  %v551 = vmul.f32 %v546, %v550
  %vm552 = vweird.f32 %v11
  %vm553 = vweird.f32 %v546
  %vm554 = vmor %vm552, %vm553
  %v555 = vsel %vm554, %v546, %v551
  %v556 = vrsqrt.pop %v12
  %v557 = vmul.f32 %v556, %v12
  %v558 = vmul.f32 %v557, %v556
  %v559 = vmul.f32 0.5, %v558
  %v560 = vsub.f32 1.5, %v559
  %v561 = vmul.f32 %v556, %v560
  %vm562 = vweird.f32 %v12
  %vm563 = vweird.f32 %v556
  %vm564 = vmor %vm562, %vm563
  %v565 = vsel %vm564, %v556, %v561
  %v566 = vrsqrt.pop %v13
  %v567 = vmul.f32 %v566, %v13
  %v568 = vmul.f32 %v567, %v566
  %v569 = vmul.f32 0.5, %v568
  %v570 = vsub.f32 1.5, %v569
  %v571 = vmul.f32 %v566, %v570
  %vm572 = vweird.f32 %v13
  %vm573 = vweird.f32 %v566
  %vm574 = vmor %vm572, %vm573
  %v575 = vsel %vm574, %v566, %v571
  %v576 = vrsqrt.pop %v14
  %v577 = vmul.f32 %v576, %v14
  %v578 = vmul.f32 %v577, %v576
  %v579 = vmul.f32 0.5, %v578
  %v580 = vsub.f32 1.5, %v579
  %v581 = vmul.f32 %v576, %v580
  %vm582 = vweird.f32 %v14
  %vm583 = vweird.f32 %v576
  %vm584 = vmor %vm582, %vm583
  %v585 = vsel %vm584, %v576, %v581
  %v586 = vperm.slane %v555, 6
  %v587 = vperm.slane %v565, 6
  %v588 = vperm.slane %v575, 6
  %v589 = vperm.slane %v585, 6
  %v590 = vmul.f32 %v542, %v586
  %v591 = vmul.f32 %v543, %v587
  %v592 = vmul.f32 %v544, %v588
  %v593 = vmul.f32 %v545, %v589
  %v598 = vrot.slane %v590, 2
  %v599 = vrot.slane %v591, 2
  %v600 = vrot.slane %v592, 2
  %v601 = vrot.slane %v593, 2
  %v606 = vadd.f32 %v456, %v598
  %v607 = vadd.f32 %v476, %v599
  %v608 = vadd.f32 %v496, %v600
  %v609 = vadd.f32 %v516, %v601
  %v610 = vld [vmem:[%s1 + $0x48] sm:$0xff]
  %v611 = vld [vmem:[%s1 + $0x50] sm:$0xff]
  %v612 = vld [vmem:[%s1 + $0x58] sm:$0xff]
  %v613 = vld [vmem:[%s1 + $0x60] sm:$0xff]
  %614 = vset.pattern.permute.xlu0 3
  %615 = vperm.xlu0 %614, %v15
  %v616 = vpop.permute.xlu0 %615
  %618 = vset.pattern.permute.xlu0 3
  %619 = vperm.xlu0 %618, %v16
  %v620 = vpop.permute.xlu0 %619
  %622 = vset.pattern.permute.xlu0 3
  %623 = vperm.xlu0 %622, %v17
  %v624 = vpop.permute.xlu0 %623
  %626 = vset.pattern.permute.xlu0 3
  %627 = vperm.xlu0 %626, %v18
  %v628 = vpop.permute.xlu0 %627
  %vm630 = vcmask 15360
  %v632 = vsel %vm630, %v610, 0
  %v635 = vsel %vm630, %v611, 0
  %v638 = vsel %vm630, %v612, 0
  %v641 = vsel %vm630, %v613, 0
  %vm643 = vcmask 1041408
  %v645 = vsel %vm643, %v606, 0
  %v648 = vsel %vm643, %v607, 0
  %v651 = vsel %vm643, %v608, 0
  %v654 = vsel %vm643, %v609, 0
  %656 = vmatpush.msra.mxu0 0.0
  %657 = vmatpush.msra.mxu0 0.0
  %658 = vmatpush.msra.mxu0 0.0
  %659 = vmatpush.msra.mxu0 0.0
  %660 = vmatpush.msra.mxu0 0.0
  %661 = vmatpush.msra.mxu0 0.0
  %662 = vmatpush.msra.mxu0 0.0
  %663 = vmatpush.msra.mxu0 0.0
  %664 = vmatpush.msra.mxu0 0.0
  %665 = vmatpush.msra.mxu0 0.0
  %666 = vmatpush.msra.mxu0 0.0
  %667 = vmatpush.msra.mxu0 0.0
  %668 = vmatpush.msra.mxu0 0.0
  %669 = vmatpush.msra.mxu0 0.0
  %670 = vmatpush.msra.mxu0 0.0
  %671 = vmatpush.msra.mxu0 %v645
  %672 = vmatmul.f32.gmra.mxu0 %v632
  %v673 = vpop.f32.mrf.mxu0
  %v674 = vadd.f32 %v616, %v673
  %675 = vmatmul.f32.gmra.mxu0 %v635
  %v676 = vpop.f32.mrf.mxu0
  %v677 = vadd.f32 %v620, %v676
  %678 = vmatmul.f32.gmra.mxu0 %v638
  %v679 = vpop.f32.mrf.mxu0
  %v680 = vadd.f32 %v624, %v679
  %681 = vmatmul.f32.gmra.mxu0 %v641
  %v682 = vpop.f32.mrf.mxu0
  %v683 = vadd.f32 %v628, %v682
  %684 = vdwg.mxu0
  %685 = vmatpush.msra.mxu0 0.0
  %686 = vmatpush.msra.mxu0 0.0
  %687 = vmatpush.msra.mxu0 0.0
  %688 = vmatpush.msra.mxu0 0.0
  %689 = vmatpush.msra.mxu0 0.0
  %690 = vmatpush.msra.mxu0 0.0
  %691 = vmatpush.msra.mxu0 0.0
  %692 = vmatpush.msra.mxu0 0.0
  %693 = vmatpush.msra.mxu0 0.0
  %694 = vmatpush.msra.mxu0 0.0
  %695 = vmatpush.msra.mxu0 0.0
  %696 = vmatpush.msra.mxu0 0.0
  %697 = vmatpush.msra.mxu0 0.0
  %698 = vmatpush.msra.mxu0 0.0
  %699 = vmatpush.msra.mxu0 0.0
  %700 = vmatpush.msra.mxu0 %v648
  %701 = vmatmul.f32.gmra.mxu0 %v632
  %v702 = vpop.f32.mrf.mxu0
  %v703 = vadd.f32 %v616, %v702
  %704 = vmatmul.f32.gmra.mxu0 %v635
  %v705 = vpop.f32.mrf.mxu0
  %v706 = vadd.f32 %v620, %v705
  %707 = vmatmul.f32.gmra.mxu0 %v638
  %v708 = vpop.f32.mrf.mxu0
  %v709 = vadd.f32 %v624, %v708
  %710 = vmatmul.f32.gmra.mxu0 %v641
  %v711 = vpop.f32.mrf.mxu0
  %v712 = vadd.f32 %v628, %v711
  %713 = vdwg.mxu0
  %714 = vmatpush.msra.mxu0 0.0
  %715 = vmatpush.msra.mxu0 0.0
  %716 = vmatpush.msra.mxu0 0.0
  %717 = vmatpush.msra.mxu0 0.0
  %718 = vmatpush.msra.mxu0 0.0
  %719 = vmatpush.msra.mxu0 0.0
  %720 = vmatpush.msra.mxu0 0.0
  %721 = vmatpush.msra.mxu0 0.0
  %722 = vmatpush.msra.mxu0 0.0
  %723 = vmatpush.msra.mxu0 0.0
  %724 = vmatpush.msra.mxu0 0.0
  %725 = vmatpush.msra.mxu0 0.0
  %726 = vmatpush.msra.mxu0 0.0
  %727 = vmatpush.msra.mxu0 0.0
  %728 = vmatpush.msra.mxu0 0.0
  %729 = vmatpush.msra.mxu0 %v651
  %730 = vmatmul.f32.gmra.mxu0 %v632
  %v731 = vpop.f32.mrf.mxu0
  %v732 = vadd.f32 %v616, %v731
  %733 = vmatmul.f32.gmra.mxu0 %v635
  %v734 = vpop.f32.mrf.mxu0
  %v735 = vadd.f32 %v620, %v734
  %736 = vmatmul.f32.gmra.mxu0 %v638
  %v737 = vpop.f32.mrf.mxu0
  %v738 = vadd.f32 %v624, %v737
  %739 = vmatmul.f32.gmra.mxu0 %v641
  %v740 = vpop.f32.mrf.mxu0
  %v741 = vadd.f32 %v628, %v740
  %742 = vdwg.mxu0
  %743 = vmatpush.msra.mxu0 0.0
  %744 = vmatpush.msra.mxu0 0.0
  %745 = vmatpush.msra.mxu0 0.0
  %746 = vmatpush.msra.mxu0 0.0
  %747 = vmatpush.msra.mxu0 0.0
  %748 = vmatpush.msra.mxu0 0.0
  %749 = vmatpush.msra.mxu0 0.0
  %750 = vmatpush.msra.mxu0 0.0
  %751 = vmatpush.msra.mxu0 0.0
  %752 = vmatpush.msra.mxu0 0.0
  %753 = vmatpush.msra.mxu0 0.0
  %754 = vmatpush.msra.mxu0 0.0
  %755 = vmatpush.msra.mxu0 0.0
  %756 = vmatpush.msra.mxu0 0.0
  %757 = vmatpush.msra.mxu0 0.0
  %758 = vmatpush.msra.mxu0 %v654
  %759 = vmatmul.f32.gmra.mxu0 %v632
  %v760 = vpop.f32.mrf.mxu0
  %v761 = vadd.f32 %v616, %v760
  %762 = vmatmul.f32.gmra.mxu0 %v635
  %v763 = vpop.f32.mrf.mxu0
  %v764 = vadd.f32 %v620, %v763
  %765 = vmatmul.f32.gmra.mxu0 %v638
  %v766 = vpop.f32.mrf.mxu0
  %v767 = vadd.f32 %v624, %v766
  %768 = vmatmul.f32.gmra.mxu0 %v641
  %v769 = vpop.f32.mrf.mxu0
  %v770 = vadd.f32 %v628, %v769
  %771 = vdwg.mxu0
  %vm772 = vcmp.gt.f32.partialorder %v674, 0.0
  %vm773 = vcmp.gt.f32.partialorder %v703, 0.0
  %vm774 = vcmp.gt.f32.partialorder %v732, 0.0
  %vm775 = vcmp.gt.f32.partialorder %v761, 0.0
  %vm776 = vcmp.gt.f32.partialorder %v677, 0.0
  %vm777 = vcmp.gt.f32.partialorder %v706, 0.0
  %vm778 = vcmp.gt.f32.partialorder %v735, 0.0
  %vm779 = vcmp.gt.f32.partialorder %v764, 0.0
  %vm780 = vcmp.gt.f32.partialorder %v680, 0.0
  %vm781 = vcmp.gt.f32.partialorder %v709, 0.0
  %vm782 = vcmp.gt.f32.partialorder %v738, 0.0
  %vm783 = vcmp.gt.f32.partialorder %v767, 0.0
  %vm784 = vcmp.gt.f32.partialorder %v683, 0.0
  %vm785 = vcmp.gt.f32.partialorder %v712, 0.0
  %vm786 = vcmp.gt.f32.partialorder %v741, 0.0
  %vm787 = vcmp.gt.f32.partialorder %v770, 0.0
  %v788 = vmul.f32 %v674, 0.01
  %v789 = vmul.f32 %v703, 0.01
  %v790 = vmul.f32 %v732, 0.01
  %v791 = vmul.f32 %v761, 0.01
  %v792 = vmul.f32 %v677, 0.01
  %v793 = vmul.f32 %v706, 0.01
  %v794 = vmul.f32 %v735, 0.01
  %v795 = vmul.f32 %v764, 0.01
  %v796 = vmul.f32 %v680, 0.01
  %v797 = vmul.f32 %v709, 0.01
  %v798 = vmul.f32 %v738, 0.01
  %v799 = vmul.f32 %v767, 0.01
  %v800 = vmul.f32 %v683, 0.01
  %v801 = vmul.f32 %v712, 0.01
  %v802 = vmul.f32 %v741, 0.01
  %v803 = vmul.f32 %v770, 0.01
  %v804 = vsel %vm772, %v674, %v788
  %v805 = vsel %vm773, %v703, %v789
  %v806 = vsel %vm774, %v732, %v790
  %v807 = vsel %vm775, %v761, %v791
  %v808 = vsel %vm776, %v677, %v792
  %v809 = vsel %vm777, %v706, %v793
  %v810 = vsel %vm778, %v735, %v794
  %v811 = vsel %vm779, %v764, %v795
  %v812 = vsel %vm780, %v680, %v796
  %v813 = vsel %vm781, %v709, %v797
  %v814 = vsel %vm782, %v738, %v798
  %v815 = vsel %vm783, %v767, %v799
  %v816 = vsel %vm784, %v683, %v800
  %v817 = vsel %vm785, %v712, %v801
  %v818 = vsel %vm786, %v741, %v802
  %v819 = vsel %vm787, %v770, %v803
  %v820 = vld [vmem:[%s1 + $0x68] sm:$0xff]
  %v821 = vld [vmem:[%s1 + $0x70] sm:$0xff]
  %v822 = vld [vmem:[%s1 + $0x78] sm:$0xff]
  %v823 = vld [vmem:[%s1 + $0x80] sm:$0xff]
  %824 = vset.pattern.permute.xlu0 4
  %825 = vperm.xlu0 %824, %v15
  %v826 = vpop.permute.xlu0 %825
  %828 = vset.pattern.permute.xlu0 4
  %829 = vperm.xlu0 %828, %v16
  %v830 = vpop.permute.xlu0 %829
  %832 = vset.pattern.permute.xlu0 4
  %833 = vperm.xlu0 %832, %v17
  %v834 = vpop.permute.xlu0 %833
  %836 = vset.pattern.permute.xlu0 4
  %837 = vperm.xlu0 %836, %v18
  %v838 = vpop.permute.xlu0 %837
  %v841 = vsel %vm253, %v820, 0
  %v844 = vsel %vm253, %v821, 0
  %v847 = vsel %vm253, %v822, 0
  %v850 = vsel %vm253, %v823, 0
  %852 = vmatpush.msra.mxu0 0.0
  %853 = vmatpush.msra.mxu0 0.0
  %854 = vmatpush.msra.mxu0 0.0
  %855 = vmatpush.msra.mxu0 0.0
  %856 = vmatpush.msra.mxu0 0.0
  %857 = vmatpush.msra.mxu0 0.0
  %858 = vmatpush.msra.mxu0 0.0
  %859 = vmatpush.msra.mxu0 0.0
  %860 = vmatpush.msra.mxu0 0.0
  %861 = vmatpush.msra.mxu0 0.0
  %862 = vmatpush.msra.mxu0 0.0
  %863 = vmatpush.msra.mxu0 0.0
  %864 = vmatpush.msra.mxu0 %v816
  %865 = vmatpush.msra.mxu0 %v812
  %866 = vmatpush.msra.mxu0 %v808
  %867 = vmatpush.msra.mxu0 %v804
  %868 = vmatmul.f32.gmra.mxu0 %v841
  %v869 = vpop.f32.mrf.mxu0
  %v870 = vadd.f32 %v826, %v869
  %871 = vmatmul.f32.gmra.mxu0 %v844
  %v872 = vpop.f32.mrf.mxu0
  %v873 = vadd.f32 %v830, %v872
  %874 = vmatmul.f32.gmra.mxu0 %v847
  %v875 = vpop.f32.mrf.mxu0
  %v876 = vadd.f32 %v834, %v875
  %877 = vmatmul.f32.gmra.mxu0 %v850
  %v878 = vpop.f32.mrf.mxu0
  %v879 = vadd.f32 %v838, %v878
  %880 = vdwg.mxu0
  %881 = vmatpush.msra.mxu0 0.0
  %882 = vmatpush.msra.mxu0 0.0
  %883 = vmatpush.msra.mxu0 0.0
  %884 = vmatpush.msra.mxu0 0.0
  %885 = vmatpush.msra.mxu0 0.0
  %886 = vmatpush.msra.mxu0 0.0
  %887 = vmatpush.msra.mxu0 0.0
  %888 = vmatpush.msra.mxu0 0.0
  %889 = vmatpush.msra.mxu0 0.0
  %890 = vmatpush.msra.mxu0 0.0
  %891 = vmatpush.msra.mxu0 0.0
  %892 = vmatpush.msra.mxu0 0.0
  %893 = vmatpush.msra.mxu0 %v817
  %894 = vmatpush.msra.mxu0 %v813
  %895 = vmatpush.msra.mxu0 %v809
  %896 = vmatpush.msra.mxu0 %v805
  %897 = vmatmul.f32.gmra.mxu0 %v841
  %v898 = vpop.f32.mrf.mxu0
  %v899 = vadd.f32 %v826, %v898
  %900 = vmatmul.f32.gmra.mxu0 %v844
  %v901 = vpop.f32.mrf.mxu0
  %v902 = vadd.f32 %v830, %v901
  %903 = vmatmul.f32.gmra.mxu0 %v847
  %v904 = vpop.f32.mrf.mxu0
  %v905 = vadd.f32 %v834, %v904
  %906 = vmatmul.f32.gmra.mxu0 %v850
  %v907 = vpop.f32.mrf.mxu0
  %v908 = vadd.f32 %v838, %v907
  %909 = vdwg.mxu0
  %910 = vmatpush.msra.mxu0 0.0
  %911 = vmatpush.msra.mxu0 0.0
  %912 = vmatpush.msra.mxu0 0.0
  %913 = vmatpush.msra.mxu0 0.0
  %914 = vmatpush.msra.mxu0 0.0
  %915 = vmatpush.msra.mxu0 0.0
  %916 = vmatpush.msra.mxu0 0.0
  %917 = vmatpush.msra.mxu0 0.0
  %918 = vmatpush.msra.mxu0 0.0
  %919 = vmatpush.msra.mxu0 0.0
  %920 = vmatpush.msra.mxu0 0.0
  %921 = vmatpush.msra.mxu0 0.0
  %922 = vmatpush.msra.mxu0 %v818
  %923 = vmatpush.msra.mxu0 %v814
  %924 = vmatpush.msra.mxu0 %v810
  %925 = vmatpush.msra.mxu0 %v806
  %926 = vmatmul.f32.gmra.mxu0 %v841
  %v927 = vpop.f32.mrf.mxu0
  %v928 = vadd.f32 %v826, %v927
  %929 = vmatmul.f32.gmra.mxu0 %v844
  %v930 = vpop.f32.mrf.mxu0
  %v931 = vadd.f32 %v830, %v930
  %932 = vmatmul.f32.gmra.mxu0 %v847
  %v933 = vpop.f32.mrf.mxu0
  %v934 = vadd.f32 %v834, %v933
  %935 = vmatmul.f32.gmra.mxu0 %v850
  %v936 = vpop.f32.mrf.mxu0
  %v937 = vadd.f32 %v838, %v936
  %938 = vdwg.mxu0
  %939 = vmatpush.msra.mxu0 0.0
  %940 = vmatpush.msra.mxu0 0.0
  %941 = vmatpush.msra.mxu0 0.0
  %942 = vmatpush.msra.mxu0 0.0
  %943 = vmatpush.msra.mxu0 0.0
  %944 = vmatpush.msra.mxu0 0.0
  %945 = vmatpush.msra.mxu0 0.0
  %946 = vmatpush.msra.mxu0 0.0
  %947 = vmatpush.msra.mxu0 0.0
  %948 = vmatpush.msra.mxu0 0.0
  %949 = vmatpush.msra.mxu0 0.0
  %950 = vmatpush.msra.mxu0 0.0
  %951 = vmatpush.msra.mxu0 %v819
  %952 = vmatpush.msra.mxu0 %v815
  %953 = vmatpush.msra.mxu0 %v811
  %954 = vmatpush.msra.mxu0 %v807
  %955 = vmatmul.f32.gmra.mxu0 %v841
  %v956 = vpop.f32.mrf.mxu0
  %v957 = vadd.f32 %v826, %v956
  %958 = vmatmul.f32.gmra.mxu0 %v844
  %v959 = vpop.f32.mrf.mxu0
  %v960 = vadd.f32 %v830, %v959
  %961 = vmatmul.f32.gmra.mxu0 %v847
  %v962 = vpop.f32.mrf.mxu0
  %v963 = vadd.f32 %v834, %v962
  %964 = vmatmul.f32.gmra.mxu0 %v850
  %v965 = vpop.f32.mrf.mxu0
  %v966 = vadd.f32 %v838, %v965
  %967 = vdwg.mxu0
  %vm968 = vcmp.gt.f32.partialorder %v870, 0.0
  %vm969 = vcmp.gt.f32.partialorder %v899, 0.0
  %vm970 = vcmp.gt.f32.partialorder %v928, 0.0
  %vm971 = vcmp.gt.f32.partialorder %v957, 0.0
  %vm972 = vcmp.gt.f32.partialorder %v873, 0.0
  %vm973 = vcmp.gt.f32.partialorder %v902, 0.0
  %vm974 = vcmp.gt.f32.partialorder %v931, 0.0
  %vm975 = vcmp.gt.f32.partialorder %v960, 0.0
  %vm976 = vcmp.gt.f32.partialorder %v876, 0.0
  %vm977 = vcmp.gt.f32.partialorder %v905, 0.0
  %vm978 = vcmp.gt.f32.partialorder %v934, 0.0
  %vm979 = vcmp.gt.f32.partialorder %v963, 0.0
  %vm980 = vcmp.gt.f32.partialorder %v879, 0.0
  %vm981 = vcmp.gt.f32.partialorder %v908, 0.0
  %vm982 = vcmp.gt.f32.partialorder %v937, 0.0
  %vm983 = vcmp.gt.f32.partialorder %v966, 0.0
  %v984 = vmul.f32 %v870, 0.01
  %v985 = vmul.f32 %v899, 0.01
  %v986 = vmul.f32 %v928, 0.01
  %v987 = vmul.f32 %v957, 0.01
  %v988 = vmul.f32 %v873, 0.01
  %v989 = vmul.f32 %v902, 0.01
  %v990 = vmul.f32 %v931, 0.01
  %v991 = vmul.f32 %v960, 0.01
  %v992 = vmul.f32 %v876, 0.01
  %v993 = vmul.f32 %v905, 0.01
  %v994 = vmul.f32 %v934, 0.01
  %v995 = vmul.f32 %v963, 0.01
  %v996 = vmul.f32 %v879, 0.01
  %v997 = vmul.f32 %v908, 0.01
  %v998 = vmul.f32 %v937, 0.01
  %v999 = vmul.f32 %v966, 0.01
  %v1000 = vsel %vm968, %v870, %v984
  %v1001 = vsel %vm969, %v899, %v985
  %v1002 = vsel %vm970, %v928, %v986
  %v1003 = vsel %vm971, %v957, %v987
  %v1004 = vsel %vm972, %v873, %v988
  %v1005 = vsel %vm973, %v902, %v989
  %v1006 = vsel %vm974, %v931, %v990
  %v1007 = vsel %vm975, %v960, %v991
  %v1008 = vsel %vm976, %v876, %v992
  %v1009 = vsel %vm977, %v905, %v993
  %v1010 = vsel %vm978, %v934, %v994
  %v1011 = vsel %vm979, %v963, %v995
  %v1012 = vsel %vm980, %v879, %v996
  %v1013 = vsel %vm981, %v908, %v997
  %v1014 = vsel %vm982, %v937, %v998
  %v1015 = vsel %vm983, %v966, %v999
  %v1016 = vld [vmem:[%s1 + $0x88] sm:$0xff]
  %1017 = vset.pattern.permute.xlu0 5
  %1018 = vperm.xlu0 %1017, %v15
  %v1019 = vpop.permute.xlu0 %1018
  %v1022 = vsel %vm253, %v1016, 0
  %1024 = vmatpush.msra.mxu0 0.0
  %1025 = vmatpush.msra.mxu0 0.0
  %1026 = vmatpush.msra.mxu0 0.0
  %1027 = vmatpush.msra.mxu0 0.0
  %1028 = vmatpush.msra.mxu0 0.0
  %1029 = vmatpush.msra.mxu0 0.0
  %1030 = vmatpush.msra.mxu0 0.0
  %1031 = vmatpush.msra.mxu0 0.0
  %1032 = vmatpush.msra.mxu0 0.0
  %1033 = vmatpush.msra.mxu0 0.0
  %1034 = vmatpush.msra.mxu0 0.0
  %1035 = vmatpush.msra.mxu0 0.0
  %1036 = vmatpush.msra.mxu0 %v1012
  %1037 = vmatpush.msra.mxu0 %v1008
  %1038 = vmatpush.msra.mxu0 %v1004
  %1039 = vmatpush.msra.mxu0 %v1000
  %1040 = vmatmul.f32.gmra.mxu0 %v1022
  %v1041 = vpop.f32.mrf.mxu0
  %v1042 = vadd.f32 %v1019, %v1041
  %1043 = vdwg.mxu0
  %1044 = vmatpush.msra.mxu0 0.0
  %1045 = vmatpush.msra.mxu0 0.0
  %1046 = vmatpush.msra.mxu0 0.0
  %1047 = vmatpush.msra.mxu0 0.0
  %1048 = vmatpush.msra.mxu0 0.0
  %1049 = vmatpush.msra.mxu0 0.0
  %1050 = vmatpush.msra.mxu0 0.0
  %1051 = vmatpush.msra.mxu0 0.0
  %1052 = vmatpush.msra.mxu0 0.0
  %1053 = vmatpush.msra.mxu0 0.0
  %1054 = vmatpush.msra.mxu0 0.0
  %1055 = vmatpush.msra.mxu0 0.0
  %1056 = vmatpush.msra.mxu0 %v1013
  %1057 = vmatpush.msra.mxu0 %v1009
  %1058 = vmatpush.msra.mxu0 %v1005
  %1059 = vmatpush.msra.mxu0 %v1001
  %1060 = vmatmul.f32.gmra.mxu0 %v1022
  %v1061 = vpop.f32.mrf.mxu0
  %v1062 = vadd.f32 %v1019, %v1061
  %1063 = vdwg.mxu0
  %1064 = vmatpush.msra.mxu0 0.0
  %1065 = vmatpush.msra.mxu0 0.0
  %1066 = vmatpush.msra.mxu0 0.0
  %1067 = vmatpush.msra.mxu0 0.0
  %1068 = vmatpush.msra.mxu0 0.0
  %1069 = vmatpush.msra.mxu0 0.0
  %1070 = vmatpush.msra.mxu0 0.0
  %1071 = vmatpush.msra.mxu0 0.0
  %1072 = vmatpush.msra.mxu0 0.0
  %1073 = vmatpush.msra.mxu0 0.0
  %1074 = vmatpush.msra.mxu0 0.0
  %1075 = vmatpush.msra.mxu0 0.0
  %1076 = vmatpush.msra.mxu0 %v1014
  %1077 = vmatpush.msra.mxu0 %v1010
  %1078 = vmatpush.msra.mxu0 %v1006
  %1079 = vmatpush.msra.mxu0 %v1002
  %1080 = vmatmul.f32.gmra.mxu0 %v1022
  %v1081 = vpop.f32.mrf.mxu0
  %v1082 = vadd.f32 %v1019, %v1081
  %1083 = vdwg.mxu0
  %1084 = vmatpush.msra.mxu0 0.0
  %1085 = vmatpush.msra.mxu0 0.0
  %1086 = vmatpush.msra.mxu0 0.0
  %1087 = vmatpush.msra.mxu0 0.0
  %1088 = vmatpush.msra.mxu0 0.0
  %1089 = vmatpush.msra.mxu0 0.0
  %1090 = vmatpush.msra.mxu0 0.0
  %1091 = vmatpush.msra.mxu0 0.0
  %1092 = vmatpush.msra.mxu0 0.0
  %1093 = vmatpush.msra.mxu0 0.0
  %1094 = vmatpush.msra.mxu0 0.0
  %1095 = vmatpush.msra.mxu0 0.0
  %1096 = vmatpush.msra.mxu0 %v1015
  %1097 = vmatpush.msra.mxu0 %v1011
  %1098 = vmatpush.msra.mxu0 %v1007
  %1099 = vmatpush.msra.mxu0 %v1003
  %1100 = vmatmul.f32.gmra.mxu0 %v1022
  %v1101 = vpop.f32.mrf.mxu0
  %v1102 = vadd.f32 %v1019, %v1101
  %1103 = vdwg.mxu0
  %v1104 = vsub.f32 %v1042, %v11
  %v1105 = vsub.f32 %v1062, %v12
  %v1106 = vsub.f32 %v1082, %v13
  %v1107 = vsub.f32 %v1102, %v14
  %v1108 = vmul.f32 %v1104, %v1104
  %v1109 = vmul.f32 %v1105, %v1105
  %v1110 = vmul.f32 %v1106, %v1106
  %v1111 = vmul.f32 %v1107, %v1107
  %v1112 = vsel %vm56, %v1108, 0.0
  %v1113 = vrot.slane %v1112, 4
  %v1114 = vadd.f32 %v1112, %v1113
  %v1115 = vrot.slane %v1114, 2
  %v1116 = vadd.f32 %v1114, %v1115
  %v1117 = vrot.slane %v1116, 1
  %v1118 = vadd.f32 %v1116, %v1117
  %v1119 = vsel %vm56, %v1109, 0.0
  %v1120 = vrot.slane %v1119, 4
  %v1121 = vadd.f32 %v1119, %v1120
  %v1122 = vrot.slane %v1121, 2
  %v1123 = vadd.f32 %v1121, %v1122
  %v1124 = vrot.slane %v1123, 1
  %v1125 = vadd.f32 %v1123, %v1124
  %v1126 = vsel %vm56, %v1110, 0.0
  %v1127 = vrot.slane %v1126, 4
  %v1128 = vadd.f32 %v1126, %v1127
  %v1129 = vrot.slane %v1128, 2
  %v1130 = vadd.f32 %v1128, %v1129
  %v1131 = vrot.slane %v1130, 1
  %v1132 = vadd.f32 %v1130, %v1131
  %v1133 = vsel %vm56, %v1111, 0.0
  %v1134 = vrot.slane %v1133, 4
  %v1135 = vadd.f32 %v1133, %v1134
  %v1136 = vrot.slane %v1135, 2
  %v1137 = vadd.f32 %v1135, %v1136
  %v1138 = vrot.slane %v1137, 1
  %v1139 = vadd.f32 %v1137, %v1138
  %v1140 = vadd.f32 %v1118, %v1125
  %v1141 = vadd.f32 %v1140, %v1132
  %v1142 = vadd.f32 %v1141, %v1139
  %1143 = vadd.xlane.f32.xlu0 %v1142
  %v1144 = vpop.xlane.xlu0 %1143
  %v1145 = vmul.f32 %v456, %v456
  %v1146 = vmul.f32 %v476, %v476
  %v1147 = vmul.f32 %v496, %v496
  %v1148 = vmul.f32 %v516, %v516
  %v1149 = vsel %vm643, %v1145, 0.0
  %v1150 = vrot.slane %v1149, 4
  %v1151 = vadd.f32 %v1149, %v1150
  %v1152 = vrot.slane %v1151, 2
  %v1153 = vadd.f32 %v1151, %v1152
  %v1154 = vrot.slane %v1153, 1
  %v1155 = vadd.f32 %v1153, %v1154
  %v1156 = vsel %vm643, %v1146, 0.0
  %v1157 = vrot.slane %v1156, 4
  %v1158 = vadd.f32 %v1156, %v1157
  %v1159 = vrot.slane %v1158, 2
  %v1160 = vadd.f32 %v1158, %v1159
  %v1161 = vrot.slane %v1160, 1
  %v1162 = vadd.f32 %v1160, %v1161
  %v1163 = vsel %vm643, %v1147, 0.0
  %v1164 = vrot.slane %v1163, 4
  %v1165 = vadd.f32 %v1163, %v1164
  %v1166 = vrot.slane %v1165, 2
  %v1167 = vadd.f32 %v1165, %v1166
  %v1168 = vrot.slane %v1167, 1
  %v1169 = vadd.f32 %v1167, %v1168
  %v1170 = vsel %vm643, %v1148, 0.0
  %v1171 = vrot.slane %v1170, 4
  %v1172 = vadd.f32 %v1170, %v1171
  %v1173 = vrot.slane %v1172, 2
  %v1174 = vadd.f32 %v1172, %v1173
  %v1175 = vrot.slane %v1174, 1
  %v1176 = vadd.f32 %v1174, %v1175
  %v1177 = vmul.f32 %v456, 1.442695
  %v1178 = vpow.pop %v1177
  %v1179 = vmul.f32 %v476, 1.442695
  %v1180 = vpow.pop %v1179
  %v1181 = vmul.f32 %v496, 1.442695
  %v1182 = vpow.pop %v1181
  %v1183 = vmul.f32 %v516, 1.442695
  %v1184 = vpow.pop %v1183
  %v1189 = vrot.slane %v1178, 2
  %v1190 = vrot.slane %v1180, 2
  %v1191 = vrot.slane %v1182, 2
  %v1192 = vrot.slane %v1184, 2
  %v1197 = vsel %vm643, %v1189, 0.0
  %v1198 = vrot.slane %v1197, 4
  %v1199 = vadd.f32 %v1197, %v1198
  %v1200 = vrot.slane %v1199, 2
  %v1201 = vadd.f32 %v1199, %v1200
  %v1202 = vrot.slane %v1201, 1
  %v1203 = vadd.f32 %v1201, %v1202
  %v1204 = vsel %vm643, %v1190, 0.0
  %v1205 = vrot.slane %v1204, 4
  %v1206 = vadd.f32 %v1204, %v1205
  %v1207 = vrot.slane %v1206, 2
  %v1208 = vadd.f32 %v1206, %v1207
  %v1209 = vrot.slane %v1208, 1
  %v1210 = vadd.f32 %v1208, %v1209
  %v1211 = vsel %vm643, %v1191, 0.0
  %v1212 = vrot.slane %v1211, 4
  %v1213 = vadd.f32 %v1211, %v1212
  %v1214 = vrot.slane %v1213, 2
  %v1215 = vadd.f32 %v1213, %v1214
  %v1216 = vrot.slane %v1215, 1
  %v1217 = vadd.f32 %v1215, %v1216
  %v1218 = vsel %vm643, %v1192, 0.0
  %v1219 = vrot.slane %v1218, 4
  %v1220 = vadd.f32 %v1218, %v1219
  %v1221 = vrot.slane %v1220, 2
  %v1222 = vadd.f32 %v1220, %v1221
  %v1223 = vrot.slane %v1222, 1
  %v1224 = vadd.f32 %v1222, %v1223
  %v1225 = vmul.f32 %v1203, 0.6
  %v1226 = vmul.f32 %v1210, 0.6
  %v1227 = vmul.f32 %v1217, 0.6
  %v1228 = vmul.f32 %v1224, 0.6
  %v1233 = vrot.slane %v456, 2
  %v1234 = vrot.slane %v476, 2
  %v1235 = vrot.slane %v496, 2
  %v1236 = vrot.slane %v516, 2
  %v1241 = vsel %vm643, %v1233, 0.0
  %v1242 = vrot.slane %v1241, 4
  %v1243 = vadd.f32 %v1241, %v1242
  %v1244 = vrot.slane %v1243, 2
  %v1245 = vadd.f32 %v1243, %v1244
  %v1246 = vrot.slane %v1245, 1
  %v1247 = vadd.f32 %v1245, %v1246
  %v1248 = vsel %vm643, %v1234, 0.0
  %v1249 = vrot.slane %v1248, 4
  %v1250 = vadd.f32 %v1248, %v1249
  %v1251 = vrot.slane %v1250, 2
  %v1252 = vadd.f32 %v1250, %v1251
  %v1253 = vrot.slane %v1252, 1
  %v1254 = vadd.f32 %v1252, %v1253
  %v1255 = vsel %vm643, %v1235, 0.0
  %v1256 = vrot.slane %v1255, 4
  %v1257 = vadd.f32 %v1255, %v1256
  %v1258 = vrot.slane %v1257, 2
  %v1259 = vadd.f32 %v1257, %v1258
  %v1260 = vrot.slane %v1259, 1
  %v1261 = vadd.f32 %v1259, %v1260
  %v1262 = vsel %vm643, %v1236, 0.0
  %v1263 = vrot.slane %v1262, 4
  %v1264 = vadd.f32 %v1262, %v1263
  %v1265 = vrot.slane %v1264, 2
  %v1266 = vadd.f32 %v1264, %v1265
  %v1267 = vrot.slane %v1266, 1
  %v1268 = vadd.f32 %v1266, %v1267
  %v1269 = vmul.f32 %v1247, 0.14285715
  %v1270 = vmul.f32 %v1254, 0.14285715
  %v1271 = vmul.f32 %v1261, 0.14285715
  %v1272 = vmul.f32 %v1268, 0.14285715
  %v1273 = vadd.f32 %v1155, %v1225
  %v1274 = vadd.f32 %v1162, %v1226
  %v1275 = vadd.f32 %v1169, %v1227
  %v1276 = vadd.f32 %v1176, %v1228
  %v1277 = vmul.f32 %v1269, 1.442695
  %v1278 = vpow.pop %v1277
  %v1279 = vmul.f32 %v1270, 1.442695
  %v1280 = vpow.pop %v1279
  %v1281 = vmul.f32 %v1271, 1.442695
  %v1282 = vpow.pop %v1281
  %v1283 = vmul.f32 %v1272, 1.442695
  %v1284 = vpow.pop %v1283
  %v1285 = vmul.f32 %v1278, 0.3578532
  %v1286 = vmul.f32 %v1280, 0.3578532
  %v1287 = vmul.f32 %v1282, 0.3578532
  %v1288 = vmul.f32 %v1284, 0.3578532
  %v1289 = vsub.f32 %v1273, %v1285
  %v1290 = vsub.f32 %v1274, %v1286
  %v1291 = vsub.f32 %v1275, %v1287
  %v1292 = vsub.f32 %v1276, %v1288
  %v1293 = vadd.f32 %v1289, 0.14811791
  %v1294 = vadd.f32 %v1290, 0.14811791
  %v1295 = vadd.f32 %v1291, 0.14811791
  %v1296 = vadd.f32 %v1292, 0.14811791
  %v1297 = vadd.f32 %v1293, %v1294
  %v1298 = vadd.f32 %v1297, %v1295
  %v1299 = vadd.f32 %v1298, %v1296
  %1300 = vadd.xlane.f32.xlu0 %v1299
  %v1301 = vpop.xlane.xlu0 %1300
  %v1302 = vlaneseq
  %v1303 = vand.u32 %v1302, 127
  %vm1304 = vcmp.eq.s32.totalorder %v1303, 0
  %v1305 = vsel %vm1304, 1, 0
  %v1306 = vcvt.s32.f32 %v1305
  %v1307 = vmul.f32 %v1144, %v1306
  %vm1308 = vcmp.eq.s32.totalorder %v1303, 1
  %v1309 = vsel %vm1308, 1, 0
  %v1310 = vcvt.s32.f32 %v1309
  %v1311 = vmul.f32 %v1301, %v1310
  %v1312 = vadd.f32 %v1307, %v1311
  %1313 = vst [vmem:[%s2] sm:$0xff] %v1312
  // Predicated region
  $region10: #{t3vae_forward.1} parent=0 // pred_check
    _
  $region11: #{t3vae_forward.1} parent=0 // pred_check_branch
    %1315 = sbr.rel (0) target = $region13
  $region12: #{t3vae_forward.1} parent=0 // pred_region
    _
  $region13: #{t3vae_forward.1} parent=0 // pred_fallthru
    _
  // Predicated region
  $region14: #{t3vae_forward.1} parent=0 // pred_check
    _
  $region15: #{t3vae_forward.1} parent=0 // pred_check_branch
    %1317 = sbr.rel (0) target = $region17
  $region16: #{t3vae_forward.1} parent=0 // pred_region
    _
  $region17: #{t3vae_forward.1} parent=0 // pred_fallthru
    _

</llo_original>
